<compile_context>
chip_gen: v7x
topology: tpu7x:2x2x1
jax: 0.10.0
libtpu: 0.0.40
codegen_flags: <defaults>
</compile_context>

<pallas_src>
import functools

import jax
import jax.numpy as jnp
from jax.experimental import pallas as pl
from jax.experimental.pallas import tpu as pltpu


def _round_up(x, m):
    return ((x + m - 1) // m) * m


def _vmem_capacity_bytes():
    try:
        return int(pltpu.get_tpu_info().vmem_capacity_bytes)
    except Exception:
        return 128 << 20  # v5e / v6e default if the query is unavailable


def _write_partial(partial_ref, total, i, *, n_true, tile_n, need_mask):
    """Mask padded rows of the edge block and store this tile's partial sum."""
    if need_mask:
        row = jax.lax.broadcasted_iota(jnp.int32, (tile_n, 1), 0) + i * tile_n
        total = jnp.where(row < n_true, total, 0.0)
    partial_ref[...] = jnp.broadcast_to(jnp.sum(total), (1, 8, 128)).astype(
        jnp.float32)


def _proto_kernel(out_ref, tgt_ref, ct_ref, csq_ref, partial_ref, *,
                  n_true, tile_n, need_mask):
    """Compact prototypes: ct block is (D, K); MXU distance expansion."""
    i = pl.program_id(0)

    o_raw = out_ref[...]                                    # (TN, D) storage dtype
    o = o_raw.astype(jnp.float32)
    t = tgt_ref[...].astype(jnp.float32)                    # (1, D) or (TN, D)

    td = jnp.sum((o - t) ** 2, axis=-1, keepdims=True)      # (TN, 1)

    # ||o - c_k||^2 = ||o||^2 - 2 o.c_k + ||c_k||^2 ; one MXU matmul, fed in
    # the storage dtype (bf16 native on v6e/v7x), f32 accumulation.
    o_sq = jnp.sum(o * o, axis=-1, keepdims=True)           # (TN, 1)
    cross = jnp.dot(o_raw, ct_ref[...],
                    preferred_element_type=jnp.float32)     # (TN, K)
    d = o_sq - 2.0 * cross + csq_ref[...]                   # (TN, K)

    se = jnp.sum(jnp.exp(-d), axis=-1, keepdims=True)       # (TN, 1)
    total = td + jnp.log(se)                                # (TN, 1)

    _write_partial(partial_ref, total, i,
                   n_true=n_true, tile_n=tile_n, need_mask=need_mask)


def _per_sample_kernel(out_ref, tgt_ref, ntc_ref, partial_ref, *,
                       n_true, tile_n, need_mask, num_protos):
    """Per-sample non-target centroids: ntc block is (K, TN, D), elementwise."""
    i = pl.program_id(0)

    o = out_ref[...].astype(jnp.float32)                    # (TN, D)
    t = tgt_ref[...].astype(jnp.float32)                    # (1, D) or (TN, D)

    td = jnp.sum((o - t) ** 2, axis=-1, keepdims=True)      # (TN, 1)

    # TODO(synk): if a bundle profile shows the XLU binding at large K, fold
    # the K lane reductions into one MXU matmul against a ones-(D, 1) vector.
    se = jnp.zeros_like(td)
    for k in range(num_protos):                             # K static -> unrolled
        c = ntc_ref[k].astype(jnp.float32)                  # (TN, D)
        dk = jnp.sum((o - c) ** 2, axis=-1, keepdims=True)  # (TN, 1)
        se = se + jnp.exp(-dk)

    total = td + jnp.log(se)                                # (TN, 1)

    _write_partial(partial_ref, total, i,
                   n_true=n_true, tile_n=tile_n, need_mask=need_mask)


def protonet_loss(outputs, target_centroid, non_target_centroids,
                  reduction="mean", *, tile_n=None):
    """outputs: [N, D];
    target_centroid: [D], [1, D] (compact) or [N, D] (per-sample);
    non_target_centroids: [K, D] (compact) or [K, N, D] (per-sample)."""
    if reduction not in ("mean", "sum", "none"):
        raise ValueError(f"Invalid reduction type: {reduction}")

    outputs = jnp.asarray(outputs)
    target_centroid = jnp.asarray(target_centroid)
    non_target_centroids = jnp.asarray(non_target_centroids)

    N, D = outputs.shape
    if N == 0:
        return jnp.float32(float("nan"))   # torch.mean over empty -> nan

    # -- target centroid: compact prototype vs per-sample ------------------
    if target_centroid.ndim == 1:
        target_centroid = target_centroid[None, :]
    tgt_compact = target_centroid.shape[0] == 1
    if not tgt_compact and target_centroid.shape[0] != N:
        raise ValueError("target_centroid must be (D,), (1, D) or (N, D)")

    # -- non-target centroids: (K, 1, D) is just compact prototypes --------
    if non_target_centroids.ndim == 3 and non_target_centroids.shape[1] == 1:
        non_target_centroids = non_target_centroids[:, 0, :]
    per_sample = non_target_centroids.ndim == 3
    K = non_target_centroids.shape[0]

    # -- tile size from a generation-aware VMEM budget ----------------------
    vmem_cap = _vmem_capacity_bytes()
    out_item = jnp.dtype(outputs.dtype).itemsize
    tgt_item = jnp.dtype(target_centroid.dtype).itemsize
    ntc_item = jnp.dtype(non_target_centroids.dtype).itemsize

    row_bytes = D * out_item
    if not tgt_compact:
        row_bytes += D * tgt_item
    if per_sample:
        row_bytes += K * D * ntc_item

    if tile_n is None:
        budget = min(16 << 20, vmem_cap // 8)    # streamed, double-buffered
        tile_n = (budget // 2) // max(row_bytes, 1)
        tile_n = min(max((tile_n // 8) * 8, 8), 2048)
    else:
        tile_n = max(_round_up(int(tile_n), 8), 8)
    tile_n = min(tile_n, _round_up(N, 8))

    grid_n = pl.cdiv(N, tile_n)
    need_mask = (N % tile_n) != 0

    per_step = tile_n * row_bytes
    resident = 0 if per_sample else (K * D * ntc_item + K * 4)
    vmem_limit = 2 * per_step + resident + (8 << 20)
    vmem_limit = int(min(max(vmem_limit, 16 << 20), (vmem_cap * 3) // 4))

    # -- specs ---------------------------------------------------------------
    outputs_spec = pl.BlockSpec((tile_n, D), lambda i: (i, 0))
    if tgt_compact:
        tgt_spec = pl.BlockSpec((1, D), lambda i: (0, 0))       # resident
    else:
        tgt_spec = pl.BlockSpec((tile_n, D), lambda i: (i, 0))  # streamed

    if per_sample:
        kernel = functools.partial(_per_sample_kernel, n_true=N, tile_n=tile_n,
                                   need_mask=need_mask, num_protos=K)
        extra_args = (non_target_centroids,)
        extra_specs = [pl.BlockSpec((K, tile_n, D), lambda i: (0, i, 0))]
    else:
        ct = non_target_centroids.T                               # (D, K)
        c_sq = jnp.sum(ct.astype(jnp.float32) ** 2, axis=0, keepdims=True)
        kernel = functools.partial(_proto_kernel, n_true=N, tile_n=tile_n,
                                   need_mask=need_mask)
        extra_args = (ct, c_sq)
        extra_specs = [pl.BlockSpec((D, K), lambda i: (0, 0)),    # resident
                       pl.BlockSpec((1, K), lambda i: (0, 0))]    # resident

    partials = pl.pallas_call(
        kernel,
        out_shape=jax.ShapeDtypeStruct((grid_n, 8, 128), jnp.float32),
        grid=(grid_n,),
        in_specs=[outputs_spec, tgt_spec] + extra_specs,
        out_specs=pl.BlockSpec((1, 8, 128), lambda i: (i, 0, 0)),
        compiler_params=pltpu.CompilerParams(
            dimension_semantics=("parallel",),
            vmem_limit_bytes=vmem_limit),
    )(outputs, target_centroid, *extra_args)

    loss = jnp.sum(partials[:, 0, 0]) / jnp.float32(N)
    # 'mean' / 'sum' / 'none' of a scalar loss are all the scalar itself.
    return loss


def _reference_loss(outputs, target_centroid, non_target_centroids):
    o = jnp.asarray(outputs).astype(jnp.float32)
    t = jnp.asarray(target_centroid).astype(jnp.float32)
    c = jnp.asarray(non_target_centroids).astype(jnp.float32)
    if t.ndim == 1:
        t = t[None, :]
    if c.ndim == 2:
        c = c[:, None, :]
    td = jnp.sum((o - t) ** 2, axis=-1)                 # (N,)
    ntd = jnp.sum((o[None] - c) ** 2, axis=-1)          # (K, N)
    se = jnp.sum(jnp.exp(-ntd), axis=0)                 # (N,)
    return jnp.mean(td + jnp.log(se))


if __name__ == "__main__":
    key = jax.random.PRNGKey(0)
    k1, k2, k3 = jax.random.split(key, 3)

    N, D, K = 8, 128, 4   # queries, embedding dim, non-target prototypes
    # Scale so the un-shifted exp(-d) stays well away from underflow.
    outputs = jax.random.normal(k1, (N, D), dtype=jnp.float32) * 0.1
    tgt_proto = jax.random.normal(k2, (D,), dtype=jnp.float32) * 0.05   # compact target
    tgt_full = jnp.broadcast_to(tgt_proto[None, :], (N, D))
    protos = jax.random.normal(k3, (K, D), dtype=jnp.float32) * 0.1     # (K, D)
    per_sample = jnp.broadcast_to(protos[:, None, :], (K, N, D))        # (K, N, D)

    ref = _reference_loss(outputs, tgt_full, per_sample)

    # 1) compact target + compact prototypes (MXU path, no wrapper broadcast)
    l_compact = jax.block_until_ready(
        protonet_loss(outputs, tgt_proto, protos, reduction="mean"))
    assert jnp.allclose(l_compact, ref, rtol=1e-4, atol=1e-4), (l_compact, ref)

    # 2) per-sample target + per-sample centroids (elementwise path)
    l_ps = jax.block_until_ready(
        protonet_loss(outputs, tgt_full, per_sample, reduction="mean"))
    assert jnp.allclose(l_ps, ref, rtol=1e-4, atol=1e-4), (l_ps, ref)

    # 3) bf16 kept in HBM, upcast inside the kernel, MXU fed bf16 directly
    l_bf = jax.block_until_ready(
        protonet_loss(outputs.astype(jnp.bfloat16),
                      tgt_proto.astype(jnp.bfloat16),
                      protos.astype(jnp.bfloat16)))
    ref_bf = _reference_loss(outputs.astype(jnp.bfloat16),
                             tgt_full.astype(jnp.bfloat16),
                             per_sample.astype(jnp.bfloat16))
    assert jnp.allclose(l_bf, ref_bf, rtol=5e-2, atol=5e-2), (l_bf, ref_bf)

    # 4) ragged N, per-sample path: partial last block + mask, multiple tiles
    N2 = 20
    o2 = jax.random.normal(k1, (N2, D), dtype=jnp.float32) * 0.1
    t2 = jax.random.normal(k2, (N2, D), dtype=jnp.float32) * 0.05
    c2 = jax.random.normal(k3, (K, N2, D), dtype=jnp.float32) * 0.1
    ref2 = _reference_loss(o2, t2, c2)
    l2 = jax.block_until_ready(protonet_loss(o2, t2, c2, tile_n=8))
    assert jnp.allclose(l2, ref2, rtol=1e-4, atol=1e-4), (l2, ref2)

    # 5) ragged N, compact-prototype MXU path: partial block + mask
    ref3 = _reference_loss(o2, t2, protos)
    l3 = jax.block_until_ready(protonet_loss(o2, t2, protos, tile_n=8))
    assert jnp.allclose(l3, ref3, rtol=1e-4, atol=1e-4), (l3, ref3)

    print("KERNEL_OK")
</pallas_src>

<mosaic_0001>
module attributes {stable_mosaic.version = 11 : i64} {
  func.func @_proto_kernel(%arg0: i32, %arg1: memref<8x128xf32, #tpu.memory_space<vmem>>, %arg2: memref<1x128xf32, #tpu.memory_space<vmem>>, %arg3: memref<128x4xf32, #tpu.memory_space<vmem>>, %arg4: memref<1x4xf32, #tpu.memory_space<vmem>>, %arg5: memref<1x8x128xf32, #tpu.memory_space<vmem>>) attributes {dimension_semantics = [#tpu.dimension_semantics<parallel>], iteration_bounds = array<i64: 1>, scalar_prefetch = 0 : i64, scratch_operands = 0 : i64, tpu.core_type = #tpu.core_type<tc>, window_params = [{transform_indices = @transform_0, window_bounds = array<i64: 8, 128>}, {pipeline_mode = #tpu.pipeline_mode<synchronous>, transform_indices = @transform_1, window_bounds = array<i64: 1, 128>}, {pipeline_mode = #tpu.pipeline_mode<synchronous>, transform_indices = @transform_2, window_bounds = array<i64: 128, 4>}, {pipeline_mode = #tpu.pipeline_mode<synchronous>, transform_indices = @transform_3, window_bounds = array<i64: 1, 4>}, {transform_indices = @transform_4, window_bounds = array<i64: 1, 8, 128>}]} {
    %c0 = arith.constant 0 : index
    %c0_0 = arith.constant 0 : index
    %0 = vector.load %arg1[%c0, %c0_0] : memref<8x128xf32, #tpu.memory_space<vmem>>, vector<8x128xf32>
    %c0_1 = arith.constant 0 : index
    %c0_2 = arith.constant 0 : index
    %1 = vector.load %arg2[%c0_1, %c0_2] : memref<1x128xf32, #tpu.memory_space<vmem>>, vector<1x128xf32>
    %2 = vector.broadcast %1 : vector<1x128xf32> to vector<8x128xf32>
    %3 = arith.subf %0, %2 : vector<8x128xf32>
    %4 = arith.mulf %3, %3 : vector<8x128xf32>
    %cst = arith.constant dense<0.000000e+00> : vector<8xf32>
    %5 = vector.multi_reduction <add>, %4, %cst [1] : vector<8x128xf32> to vector<8xf32>
    %6 = vector.shape_cast %5 : vector<8xf32> to vector<8x1xf32>
    %7 = arith.mulf %0, %0 : vector<8x128xf32>
    %cst_3 = arith.constant dense<0.000000e+00> : vector<8xf32>
    %8 = vector.multi_reduction <add>, %7, %cst_3 [1] : vector<8x128xf32> to vector<8xf32>
    %9 = vector.shape_cast %8 : vector<8xf32> to vector<8x1xf32>
    %c0_4 = arith.constant 0 : index
    %c0_5 = arith.constant 0 : index
    %10 = vector.load %arg3[%c0_4, %c0_5] : memref<128x4xf32, #tpu.memory_space<vmem>>, vector<128x4xf32>
    %cst_6 = arith.constant dense<0.000000e+00> : vector<8x4xf32>
    %11 = tpu.matmul %0, %10, %cst_6 {dimension_numbers = #tpu.dot_dimension_numbers<[1], [0], [0], [1], [0, 0, 1, 1], [], []>} : vector<8x128xf32>, vector<128x4xf32>, vector<8x4xf32> -> vector<8x4xf32>
    %cst_7 = arith.constant 2.000000e+00 : f32
    %12 = vector.broadcast %cst_7 : f32 to vector<8x4xf32>
    %13 = arith.mulf %12, %11 : vector<8x4xf32>
    %14 = vector.broadcast %9 : vector<8x1xf32> to vector<8x4xf32>
    %15 = arith.subf %14, %13 : vector<8x4xf32>
    %c0_8 = arith.constant 0 : index
    %c0_9 = arith.constant 0 : index
    %16 = vector.load %arg4[%c0_8, %c0_9] : memref<1x4xf32, #tpu.memory_space<vmem>>, vector<1x4xf32>
    %17 = vector.broadcast %16 : vector<1x4xf32> to vector<8x4xf32>
    %18 = arith.addf %15, %17 : vector<8x4xf32>
    %cst_10 = arith.constant 0.000000e+00 : f32
    %19 = vector.broadcast %cst_10 : f32 to vector<8x4xf32>
    %20 = arith.subf %19, %18 : vector<8x4xf32>
    %21 = math.exp %20 : vector<8x4xf32>
    %cst_11 = arith.constant dense<0.000000e+00> : vector<8xf32>
    %22 = vector.multi_reduction <add>, %21, %cst_11 [1] : vector<8x4xf32> to vector<8xf32>
    %23 = vector.shape_cast %22 : vector<8xf32> to vector<8x1xf32>
    %24 = math.log %23 : vector<8x1xf32>
    %25 = arith.addf %6, %24 : vector<8x1xf32>
    %26 = vector.shape_cast %25 : vector<8x1xf32> to vector<1x8x1xf32>
    %cst_12 = arith.constant dense<0.000000e+00> : vector<1xf32>
    %27 = vector.multi_reduction <add>, %26, %cst_12 [1, 2] : vector<1x8x1xf32> to vector<1xf32>
    %28 = vector.shape_cast %27 : vector<1xf32> to vector<1x1x1xf32>
    %29 = vector.extract %28[0, 0, 0] : f32 from vector<1x1x1xf32>
    %30 = vector.broadcast %29 : f32 to vector<1x8x128xf32>
    %c0_13 = arith.constant 0 : index
    %c0_14 = arith.constant 0 : index
    %c0_15 = arith.constant 0 : index
    %31 = vector.load %arg5[%c0_13, %c0_14, %c0_15] : memref<1x8x128xf32, #tpu.memory_space<vmem>>, vector<1x8x128xf32>
    tpu.vector_store %arg5[%c0_13, %c0_14, %c0_15], %30 {strides = array<i32>} : memref<1x8x128xf32, #tpu.memory_space<vmem>>, vector<1x8x128xf32>,
    return
  }
  func.func @transform_0(%arg0: i32) -> (i32, i32) {
    %c0_i32 = arith.constant 0 : i32
    %c0_i32_0 = arith.constant 0 : i32
    return %arg0, %c0_i32 : i32, i32
  }
  func.func @transform_1(%arg0: i32) -> (i32, i32) {
    %c0_i32 = arith.constant 0 : i32
    %c0_i32_0 = arith.constant 0 : i32
    %c0_i32_1 = arith.constant 0 : i32
    return %c0_i32, %c0_i32_0 : i32, i32
  }
  func.func @transform_2(%arg0: i32) -> (i32, i32) {
    %c0_i32 = arith.constant 0 : i32
    %c0_i32_0 = arith.constant 0 : i32
    %c0_i32_1 = arith.constant 0 : i32
    return %c0_i32, %c0_i32_0 : i32, i32
  }
  func.func @transform_3(%arg0: i32) -> (i32, i32) {
    %c0_i32 = arith.constant 0 : i32
    %c0_i32_0 = arith.constant 0 : i32
    %c0_i32_1 = arith.constant 0 : i32
    return %c0_i32, %c0_i32_0 : i32, i32
  }
  func.func @transform_4(%arg0: i32) -> (i32, i32, i32) {
    %c0_i32 = arith.constant 0 : i32
    %c0_i32_0 = arith.constant 0 : i32
    %c0_i32_1 = arith.constant 0 : i32
    return %arg0, %c0_i32, %c0_i32_0 : i32, i32, i32
  }
}

</mosaic_0001>

<llo_original>
// kernel: tpu_custom_call.1
$region0: #{tpu_custom_call.1}
  #allocation0 [shape = 'u32[]', space=smem, size = 0x4, offset = 0x4, fixed_abs, tag = 'smem constant byte address 0x4 - core index']
  #allocation1 [shape = 'u32[144,128]{1,0:T(1,128)}', space=vmem, size = 0x12000, scoped, tag = 'internal scratch']
  %s0 = inlined_call_operand.vmem [shape: f32[8,128], index: 0, kind: input, shape index: {}]
  %s1 = inlined_call_operand.vmem [shape: f32[1,128], index: 1, kind: input, shape index: {}]
  %s2 = inlined_call_operand.vmem [shape: f32[128,4], index: 2, kind: input, shape index: {}]
  %s3 = inlined_call_operand.vmem [shape: f32[1,4], index: 3, kind: input, shape index: {}]
  %s4 = inlined_call_operand.hbm [shape: f32[1,8,128], index: 4, kind: output, shape index: {}]
  %s5 = sld [smem:[#allocation0]]
  $region26: #{tpu_custom_call.1} parent=0
    _
  %s7 = ssub.s32 1, %s5
  %s8 = scalar_select 0, %s7, %s5
  $region1: #{tpu_custom_call.1} parent=0
    #allocation2 [shape = 'u8[4096]{0}', space=vmem, size = 0x1000, scoped, tag = 'output window, operand 0, single buffered']
    #allocation3 [shape = 's32[1]{0}', space=sflag, size = 0x4, scoped, tag = 'scoped memory for tpu_custom_call.1']
    %9 = vsyncpa [#allocation3], 0
    // Predicated region
    $region2: #{tpu_custom_call.1} parent=1 // pred_check
      _
    $region3: #{tpu_custom_call.1} parent=1 // pred_check_branch
      %11 = sbr.rel (0) target = $region5
    $region4: #{tpu_custom_call.1} parent=1 // pred_region
      _
    $region5: #{tpu_custom_call.1} parent=1 // pred_fallthru
      _
    // Predicated region
    $region6: #{tpu_custom_call.1} parent=1 // pred_check
      _
    $region7: #{tpu_custom_call.1} parent=1 // pred_check_branch
      %13 = sbr.rel (0) target = $region9
    $region8: #{tpu_custom_call.1} parent=1 // pred_region
      _
    $region9: #{tpu_custom_call.1} parent=1 // pred_fallthru
      _
    // Predicated region
    $region10: #{tpu_custom_call.1} parent=1 // pred_check
      _
    $region11: #{tpu_custom_call.1} parent=1 // pred_check_branch
      %15 = sbr.rel (0) target = $region13
    $region12: #{tpu_custom_call.1} parent=1 // pred_region
      _
    $region13: #{tpu_custom_call.1} parent=1 // pred_fallthru
      _
    // Predicated region
    $region14: #{tpu_custom_call.1} parent=1 // pred_check
      _
    $region15: #{tpu_custom_call.1} parent=1 // pred_check_branch
      %17 = sbr.rel (0) target = $region17
    $region16: #{tpu_custom_call.1} parent=1 // pred_region
      _
    $region17: #{tpu_custom_call.1} parent=1 // pred_fallthru
      _
    %v18 = vld [vmem:[%s0] sm:$0xff]
    %v19 = vld [vmem:[%s1] sm:$0x1]
    %v21 = vlaneseq
    %v22 = vshrl.u32 %v21, 7
    %v23 = vsub.s32 0, %v22
    %v24 = vrot.slane %v19, %v23
    %v26 = vsub.f32 %v18, %v24
    %v27 = vmul.f32 %v26, %v26
    %28 = vadd.xlane.f32.xlu0 %v27
    %v29 = vpop.xlane.xlu0 %28
    %v30 = vmul.f32 %v18, %v18
    %31 = vadd.xlane.f32.xlu0 %v30
    %v32 = vpop.xlane.xlu0 %31
    %v33 = vld [vmem:[%s2] sm:$0xff]
    %v34 = vld [vmem:[%s2 + $0x8] sm:$0xff]
    %v35 = vld [vmem:[%s2 + $0x10] sm:$0xff]
    %v36 = vld [vmem:[%s2 + $0x18] sm:$0xff]
    %v37 = vld [vmem:[%s2 + $0x20] sm:$0xff]
    %v38 = vld [vmem:[%s2 + $0x28] sm:$0xff]
    %v39 = vld [vmem:[%s2 + $0x30] sm:$0xff]
    %v40 = vld [vmem:[%s2 + $0x38] sm:$0xff]
    %v41 = vld [vmem:[%s2 + $0x40] sm:$0xff]
    %v42 = vld [vmem:[%s2 + $0x48] sm:$0xff]
    %v43 = vld [vmem:[%s2 + $0x50] sm:$0xff]
    %v44 = vld [vmem:[%s2 + $0x58] sm:$0xff]
    %v45 = vld [vmem:[%s2 + $0x60] sm:$0xff]
    %v46 = vld [vmem:[%s2 + $0x68] sm:$0xff]
    %v47 = vld [vmem:[%s2 + $0x70] sm:$0xff]
    %v48 = vld [vmem:[%s2 + $0x78] sm:$0xff]
    %49 = vmatprep.subr.mxu0 0.0
    %50 = vmatpush1.msra.mxu0 %v33
    %51 = vmatprep.subr.mxu0 0.0
    %52 = vmatpush1.msra.mxu0 %v34
    %53 = vmatprep.subr.mxu0 0.0
    %54 = vmatpush1.msra.mxu0 %v35
    %55 = vmatprep.subr.mxu0 0.0
    %56 = vmatpush1.msra.mxu0 %v36
    %57 = vmatprep.subr.mxu0 0.0
    %58 = vmatpush1.msra.mxu0 %v37
    %59 = vmatprep.subr.mxu0 0.0
    %60 = vmatpush1.msra.mxu0 %v38
    %61 = vmatprep.subr.mxu0 0.0
    %62 = vmatpush1.msra.mxu0 %v39
    %63 = vmatprep.subr.mxu0 0.0
    %64 = vmatpush1.msra.mxu0 %v40
    %65 = vmatprep.subr.mxu0 0.0
    %66 = vmatpush1.msra.mxu0 %v41
    %67 = vmatprep.subr.mxu0 0.0
    %68 = vmatpush1.msra.mxu0 %v42
    %69 = vmatprep.subr.mxu0 0.0
    %70 = vmatpush1.msra.mxu0 %v43
    %71 = vmatprep.subr.mxu0 0.0
    %72 = vmatpush1.msra.mxu0 %v44
    %73 = vmatprep.subr.mxu0 0.0
    %74 = vmatpush1.msra.mxu0 %v45
    %75 = vmatprep.subr.mxu0 0.0
    %76 = vmatpush1.msra.mxu0 %v46
    %77 = vmatprep.subr.mxu0 0.0
    %78 = vmatpush1.msra.mxu0 %v47
    %79 = vmatprep.subr.mxu0 0.0
    %80 = vmatpush1.msra.mxu0 %v48
    %81 = vmatprep.subr.mxu0 0.0
    %82 = vmatpush1.msra.mxu0 0.0
    %83 = vmatprep.subr.mxu0 0.0
    %84 = vmatpush1.msra.mxu0 0.0
    %85 = vmatprep.subr.mxu0 0.0
    %86 = vmatpush1.msra.mxu0 0.0
    %87 = vmatprep.subr.mxu0 0.0
    %88 = vmatpush1.msra.mxu0 0.0
    %89 = vmatprep.subr.mxu0 0.0
    %90 = vmatpush1.msra.mxu0 0.0
    %91 = vmatprep.subr.mxu0 0.0
    %92 = vmatpush1.msra.mxu0 0.0
    %93 = vmatprep.subr.mxu0 0.0
    %94 = vmatpush1.msra.mxu0 0.0
    %95 = vmatprep.subr.mxu0 0.0
    %96 = vmatpush1.msra.mxu0 0.0
    %97 = vmatprep.subr.mxu0 0.0
    %98 = vmatpush1.msra.mxu0 0.0
    %99 = vmatprep.subr.mxu0 0.0
    %100 = vmatpush1.msra.mxu0 0.0
    %101 = vmatprep.subr.mxu0 0.0
    %102 = vmatpush1.msra.mxu0 0.0
    %103 = vmatprep.subr.mxu0 0.0
    %104 = vmatpush1.msra.mxu0 0.0
    %105 = vmatprep.subr.mxu0 0.0
    %106 = vmatpush1.msra.mxu0 0.0
    %107 = vmatprep.subr.mxu0 0.0
    %108 = vmatpush1.msra.mxu0 0.0
    %109 = vmatprep.subr.mxu0 0.0
    %110 = vmatpush1.msra.mxu0 0.0
    %111 = vmatprep.subr.mxu0 0.0
    %112 = vmatpush1.msra.mxu0 0.0
    %113 = vmatprep.mubr.f32.mxu0 0.0
    %114 = vmatmul.mubr.f32.gmra.mrb[0].mxu0 %v18
    %v115 = vpop.f32.mrb[0].mxu0
    %v116 = vadd.f32 0.0, %v115
    %v117 = vpop.f32.mrb[0].mxu0
    %118 = vdwg.mxu0
    %v119 = vmul.f32 %v116, 2.0
    %v120 = vsub.f32 %v32, %v119
    %v121 = vld [vmem:[%s3] sm:$0x1]
    %v123 = vlaneseq
    %v124 = vshrl.u32 %v123, 7
    %v125 = vsub.s32 0, %v124
    %v126 = vrot.slane %v121, %v125
    %v128 = vadd.f32 %v120, %v126
    %v129 = vsub.f32 0.0, %v128
    %v130 = vmul.f32 %v129, 1.442695
    %v131 = vpow.pop %v130
    %vm132 = vcmask 31744
    %v133 = vsel %vm132, %v131, 0.0
    %134 = vadd.xlane.f32.xlu0 %v133
    %v135 = vpop.xlane.xlu0 %134
    %v136 = vlog2.pop %v135
    %v137 = vmul.f32 %v136, 0.6931472
    %v138 = vadd.f32 %v29, %v137
    %vm139 = vcmask 7168
    %v140 = vsel %vm139, %v138, 0.0
    %141 = vadd.xlane.f32.xlu0 %v140
    %v142 = vpop.xlane.xlu0 %141
    %v143 = vrot.slane %v142, 4
    %v144 = vadd.f32 %v142, %v143
    %v145 = vrot.slane %v144, 2
    %v146 = vadd.f32 %v144, %v145
    %v147 = vrot.slane %v146, 1
    %v148 = vadd.f32 %v146, %v147
    %s149 = vtos %v148
    %v150 = vstv %s149
    %151 = vst [vmem:[#allocation2] sm:$0xff] %v150
    // Predicated region
    $region18: #{tpu_custom_call.1} parent=1 // pred_check
      _
    $region19: #{tpu_custom_call.1} parent=1 // pred_check_branch
      %153 = sbr.rel (0) target = $region21
    $region20: #{tpu_custom_call.1} parent=1 // pred_region
      %s155 = ssub.s32 128, 128
      %156 = vsyncadd [#allocation3], %s155
      %s158 = sshll.u32 [#allocation2], 4
      %s159 = int_to_ptr.vmem [resolvable:$true] %s158
      %161 = dma.vmem_to_hbm [thread:$0]  %s159, 128, %s4, [#allocation3]
    $region21: #{tpu_custom_call.1} parent=1 // pred_fallthru
      _
    // Predicated region
    $region22: #{tpu_custom_call.1} parent=1 // pred_check
      _
    $region23: #{tpu_custom_call.1} parent=1 // pred_check_branch
      %163 = sbr.rel (0) target = $region25
    $region24: #{tpu_custom_call.1} parent=1 // pred_region
      %164 = dma.done [#allocation3], 128
    $region25: #{tpu_custom_call.1} parent=1 // pred_fallthru
      _
    %165 = vsyncpa [#allocation3], 1

</llo_original>
